<compile_context>
chip_gen: v7x
topology: tpu7x:2x2x1
jax: 0.10.0
libtpu: 0.0.40
codegen_flags: <defaults>
</compile_context>

<pallas_src>
import functools

import jax
import jax.numpy as jnp
import numpy as np
from jax import lax
from jax.experimental import pallas as pl
from jax.experimental.pallas import tpu as pltpu

_LANES = 128


# ----------------------------------------------------------------------------
# Elementwise loss functions (the `loss_fun` of the PyTorch module).
# ----------------------------------------------------------------------------
def l1_elementwise(x, t):
    return jnp.abs(x - t)


def mse_elementwise(x, t):
    d = x - t
    return d * d


# ----------------------------------------------------------------------------
# Pallas kernel: Nb samples per grid step, each sample laid out as (S, 128).
# ----------------------------------------------------------------------------
def _ohem_kernel(x_ref, t_ref, out_ref, *, loss_fn, m_valid, s_rows):
    # Keep HBM dtype (possibly bf16) on the wire; compute in f32.
    x = x_ref[...].astype(jnp.float32)        # (Nb, S, 128)
    t = t_ref[...].astype(jnp.float32)        # (Nb, S, 128)
    d = x - t
    diff = loss_fn(x, t)                      # elementwise loss ("detached": fwd only)

    if m_valid == s_rows * _LANES:
        # No tail padding: plain per-sample reductions over the (S, 128) plane.
        dmin = jnp.min(diff, axis=(1, 2), keepdims=True)    # (Nb, 1, 1)
        dmax = jnp.max(diff, axis=(1, 2), keepdims=True)
    else:
        # Tail padding only affects min/max (the padded tail of diff is loss_fn(0,0)).
        # One batch-invariant (S, 128) validity mask; broadcast over Nb.
        row = lax.broadcasted_iota(jnp.int32, (s_rows, _LANES), 0)
        col = lax.broadcasted_iota(jnp.int32, (s_rows, _LANES), 1)
        valid = ((row * _LANES + col) < m_valid)[None, :, :]
        dmin = jnp.min(jnp.where(valid, diff, jnp.inf), axis=(1, 2), keepdims=True)
        dmax = jnp.max(jnp.where(valid, diff, -jnp.inf), axis=(1, 2), keepdims=True)

    # Per-sample scalar scale; division by zero (constant sample) matches the
    # PyTorch reference's behavior.
    scale = 10.0 / (dmax - dmin)                            # (Nb, 1, 1)

    # Both x and t are zero-padded, so d == 0 in the tail -> the sum needs no mask.
    w = jnp.abs((diff - dmin) * scale * d)
    per_sample = jnp.sum(w, axis=(1, 2), keepdims=True)     # (Nb, 1, 1)

    # Lane-dense (Nb, 1, 128) write; wrapper reads lane 0.
    out_ref[...] = jnp.broadcast_to(per_sample, out_ref.shape).astype(out_ref.dtype)


# ----------------------------------------------------------------------------
# Wrapper: layout plumbing + pallas_call + final mean.
# ----------------------------------------------------------------------------
def ohemf12d_loss(inputs, targets, *, loss_fn=l1_elementwise,
                  target_block_bytes=1 << 20):
    """Pallas implementation of OHEMF12d.forward.

    inputs, targets: same shape, batch dim first (ndim 3 or 4 in the original
    module; any ndim >= 2 works here).  loss_fn must be elementwise.
    Returns a scalar float32 loss.
    """
    assert inputs.shape == targets.shape, "inputs/targets shape mismatch"
    assert inputs.ndim >= 2, "need a batch dim plus at least one feature dim"

    N = inputs.shape[0]
    M = int(np.prod(inputs.shape[1:]))
    assert M >= 1

    S = pl.cdiv(M, _LANES)
    padded_m = S * _LANES

    # Keep the HBM dtype (no wrapper-side upcast); reshape is a free bitcast.
    xf = inputs.reshape(N, M)
    tf = targets.reshape(N, M)
    if padded_m != M:
        # Zero-pad both -> d == 0 in the tail, so only min/max need masking.
        xf = jnp.pad(xf, ((0, 0), (0, padded_m - M)))
        tf = jnp.pad(tf, ((0, 0), (0, padded_m - M)))
    xf = xf.reshape(N, S, _LANES)   # lane-dense per-sample slab
    tf = tf.reshape(N, S, _LANES)

    # Batch-block sizing: ~1 MiB per input block, but keep >= 2 grid blocks when
    # N >= 2 so "parallel" can shard across v7x's two TensorCores.
    itemsize = jnp.dtype(xf.dtype).itemsize
    sample_bytes = padded_m * itemsize
    nb = max(1, min(N, target_block_bytes // max(1, sample_bytes)))
    if N >= 2 and pl.cdiv(N, nb) < 2:
        nb = pl.cdiv(N, 2)
    num_blocks = pl.cdiv(N, nb)
    n_pad = num_blocks * nb
    if n_pad != N:
        # Padded (all-zero) samples produce NaN per-sample sums; they are sliced
        # away below and never enter the final reduction.
        xf = jnp.pad(xf, ((0, n_pad - N), (0, 0), (0, 0)))
        tf = jnp.pad(tf, ((0, n_pad - N), (0, 0), (0, 0)))

    kernel = functools.partial(_ohem_kernel, loss_fn=loss_fn, m_valid=M, s_rows=S)

    in_spec = pl.BlockSpec((nb, S, _LANES), lambda i: (i, 0, 0))
    out_spec = pl.BlockSpec((nb, 1, _LANES), lambda i: (i, 0, 0))

    # Explicit VMEM budget: 2 inputs x 2 pipeline buffers in the input dtype plus
    # a few f32 block-sized temporaries (d, diff, w) with headroom.
    block_in_bytes = nb * S * _LANES * itemsize
    block_f32_bytes = nb * S * _LANES * 4
    vmem_need = 4 * block_in_bytes + 4 * block_f32_bytes + (2 << 20)
    vmem_limit = int(min(96 << 20, max(32 << 20, vmem_need)))

    sums = pl.pallas_call(
        kernel,
        out_shape=jax.ShapeDtypeStruct((n_pad, 1, _LANES), jnp.float32),
        grid_spec=pltpu.PrefetchScalarGridSpec(
            num_scalar_prefetch=0,
            grid=(num_blocks,),
            in_specs=[in_spec, in_spec],
            out_specs=out_spec,
        ),
        compiler_params=pltpu.CompilerParams(
            dimension_semantics=("parallel",),
            vmem_limit_bytes=vmem_limit,
        ),
    )(xf, tf)

    per_sample = sums[:N, 0, 0]                       # (N,) valid samples only
    return jnp.sum(per_sample) / jnp.float32(N * M)   # global mean over all elements


# ----------------------------------------------------------------------------
# Pure-JAX reference mirroring the PyTorch forward, for correctness check.
# ----------------------------------------------------------------------------
def _reference(inputs, targets, *, loss_fn=l1_elementwise):
    diff = loss_fn(inputs, targets)
    B = diff.shape[0]
    flat = diff.reshape(B, -1)
    dmin = jnp.min(flat, axis=1).reshape((B,) + (1,) * (inputs.ndim - 1))
    dmax = jnp.max(flat, axis=1).reshape((B,) + (1,) * (inputs.ndim - 1))
    diffw = 10.0 * (diff - dmin) / (dmax - dmin)
    return jnp.mean(jnp.abs(diffw * (inputs - targets)))


if __name__ == "__main__":
    N, C, H, W = 2, 4, 16, 16          # small NCHW shapes consistent with the module

    key = jax.random.PRNGKey(0)
    k1, k2 = jax.random.split(key)
    inputs = jax.random.uniform(k1, (N, C, H, W), dtype=jnp.float32)
    targets = jax.random.uniform(k2, (N, C, H, W), dtype=jnp.float32)

    out = ohemf12d_loss(inputs, targets, loss_fn=l1_elementwise)
    out = jax.block_until_ready(out)

    ref = _reference(inputs, targets, loss_fn=l1_elementwise)
    np.testing.assert_allclose(np.asarray(out), np.asarray(ref), rtol=2e-5, atol=2e-5)

    print("KERNEL_OK")
</pallas_src>

<mosaic_0001>
module attributes {stable_mosaic.version = 11 : i64} {
  func.func @_ohem_kernel(%arg0: i32, %arg1: memref<1x8x128xf32, #tpu.memory_space<vmem>>, %arg2: memref<1x8x128xf32, #tpu.memory_space<vmem>>, %arg3: memref<1x1x128xf32, #tpu.memory_space<vmem>>) attributes {dimension_semantics = [#tpu.dimension_semantics<parallel>], iteration_bounds = array<i64: 2>, scalar_prefetch = 0 : i64, scratch_operands = 0 : i64, tpu.core_type = #tpu.core_type<tc>, window_params = [{transform_indices = @transform_0, window_bounds = array<i64: 1, 8, 128>}, {transform_indices = @transform_1, window_bounds = array<i64: 1, 8, 128>}, {transform_indices = @transform_2, window_bounds = array<i64: 1, 1, 128>}]} {
    %c0 = arith.constant 0 : index
    %c0_0 = arith.constant 0 : index
    %c0_1 = arith.constant 0 : index
    %0 = vector.load %arg1[%c0, %c0_0, %c0_1] : memref<1x8x128xf32, #tpu.memory_space<vmem>>, vector<1x8x128xf32>
    %c0_2 = arith.constant 0 : index
    %c0_3 = arith.constant 0 : index
    %c0_4 = arith.constant 0 : index
    %1 = vector.load %arg2[%c0_2, %c0_3, %c0_4] : memref<1x8x128xf32, #tpu.memory_space<vmem>>, vector<1x8x128xf32>
    %2 = arith.subf %0, %1 : vector<1x8x128xf32>
    %3 = arith.subf %0, %1 : vector<1x8x128xf32>
    %4 = math.absf %3 : vector<1x8x128xf32>
    %cst = arith.constant dense<0x7F800000> : vector<1xf32>
    %5 = vector.multi_reduction <minimumf>, %4, %cst [1, 2] : vector<1x8x128xf32> to vector<1xf32>
    %6 = vector.shape_cast %5 : vector<1xf32> to vector<1x1x1xf32>
    %cst_5 = arith.constant dense<0xFF800000> : vector<1xf32>
    %7 = vector.multi_reduction <maximumf>, %4, %cst_5 [1, 2] : vector<1x8x128xf32> to vector<1xf32>
    %8 = vector.shape_cast %7 : vector<1xf32> to vector<1x1x1xf32>
    %9 = arith.subf %8, %6 : vector<1x1x1xf32>
    %cst_6 = arith.constant 1.000000e+01 : f32
    %10 = vector.broadcast %cst_6 : f32 to vector<1x1x1xf32>
    %11 = arith.divf %10, %9 : vector<1x1x1xf32>
    %12 = vector.broadcast %6 : vector<1x1x1xf32> to vector<1x8x128xf32>
    %13 = arith.subf %4, %12 : vector<1x8x128xf32>
    %14 = vector.broadcast %11 : vector<1x1x1xf32> to vector<1x8x128xf32>
    %15 = arith.mulf %13, %14 : vector<1x8x128xf32>
    %16 = arith.mulf %15, %2 : vector<1x8x128xf32>
    %17 = math.absf %16 : vector<1x8x128xf32>
    %cst_7 = arith.constant dense<0.000000e+00> : vector<1xf32>
    %18 = vector.multi_reduction <add>, %17, %cst_7 [1, 2] : vector<1x8x128xf32> to vector<1xf32>
    %19 = vector.shape_cast %18 : vector<1xf32> to vector<1x1x1xf32>
    %20 = vector.shape_cast %19 : vector<1x1x1xf32> to vector<1x1x1xf32>
    %21 = vector.broadcast %20 : vector<1x1x1xf32> to vector<1x1x128xf32>
    %c0_8 = arith.constant 0 : index
    %c0_9 = arith.constant 0 : index
    %c0_10 = arith.constant 0 : index
    %22 = vector.load %arg3[%c0_8, %c0_9, %c0_10] : memref<1x1x128xf32, #tpu.memory_space<vmem>>, vector<1x1x128xf32>
    tpu.vector_store %arg3[%c0_8, %c0_9, %c0_10], %21 {strides = array<i32>} : memref<1x1x128xf32, #tpu.memory_space<vmem>>, vector<1x1x128xf32>,
    return
  }
  func.func @transform_0(%arg0: i32) -> (i32, i32, i32) {
    %c0_i32 = arith.constant 0 : i32
    %c0_i32_0 = arith.constant 0 : i32
    %c0_i32_1 = arith.constant 0 : i32
    return %arg0, %c0_i32, %c0_i32_0 : i32, i32, i32
  }
  func.func @transform_1(%arg0: i32) -> (i32, i32, i32) {
    %c0_i32 = arith.constant 0 : i32
    %c0_i32_0 = arith.constant 0 : i32
    %c0_i32_1 = arith.constant 0 : i32
    return %arg0, %c0_i32, %c0_i32_0 : i32, i32, i32
  }
  func.func @transform_2(%arg0: i32) -> (i32, i32, i32) {
    %c0_i32 = arith.constant 0 : i32
    %c0_i32_0 = arith.constant 0 : i32
    %c0_i32_1 = arith.constant 0 : i32
    return %arg0, %c0_i32, %c0_i32_0 : i32, i32, i32
  }
}

</mosaic_0001>

<llo_original>
// kernel: tpu_custom_call.1
$region0: #{tpu_custom_call.1}
  #allocation0 [shape = 'u32[]', space=smem, size = 0x4, offset = 0x4, fixed_abs, tag = 'smem constant byte address 0x4 - core index']
  #allocation1 [shape = 'u32[144,128]{1,0:T(1,128)}', space=vmem, size = 0x12000, scoped, tag = 'internal scratch']
  %s0 = inlined_call_operand.hbm [shape: f32[2,8,128], index: 0, kind: input, shape index: {}]
  %s1 = inlined_call_operand.hbm [shape: f32[2,8,128], index: 1, kind: input, shape index: {}]
  %s2 = inlined_call_operand.hbm [shape: f32[2,1,128], index: 2, kind: output, shape index: {}]
  %s3 = sld [smem:[#allocation0]]
  $region49: #{tpu_custom_call.1} parent=0
    _
  %s5 = ssub.s32 1, %s3
  %s6 = scalar_select 0, %s5, %s3
  $region1: #{tpu_custom_call.1} parent=0
    #allocation2 [shape = 'u8[8192]{0}', space=vmem, size = 0x2000, scoped, tag = 'input window, operand 0']
    #allocation3 [shape = 's32[2]{0}', space=sflag, size = 0x8, scoped, tag = 'scoped memory for tpu_custom_call.1']
    #allocation4 [shape = 's32[2]{0}', space=sflag, size = 0x8, scoped, tag = 'scoped memory for tpu_custom_call.1']
    #allocation5 [shape = 'u8[8192]{0}', space=vmem, size = 0x2000, scoped, tag = 'input window, operand 1']
    #allocation6 [shape = 's32[2]{0}', space=sflag, size = 0x8, scoped, tag = 'scoped memory for tpu_custom_call.1']
    #allocation7 [shape = 'u8[1024]{0}', space=vmem, size = 0x400, scoped, tag = 'output window, operand 0']
    %7 = vsyncpa [#allocation3], 0
    %s8 = scalar_lea.sflag [#allocation3], 1
    %9 = vsyncpa %s8, 0
    %10 = vsyncpa [#allocation6], 0
    %s11 = scalar_lea.sflag [#allocation6], 1
    %12 = vsyncpa %s11, 0
    %13 = vsyncpa [#allocation4], 0
    %s14 = scalar_lea.sflag [#allocation4], 1
    %15 = vsyncpa %s14, 0
    loop: start=0, step=1, limit=4
    $region2: #{tpu_custom_call.1} parent=1 // loop_pre_header
      _
    $region3: #{tpu_custom_call.1} parent=1 // loop_header
      %s17 = sphi 0, %s21
      %p18 = scmp.ge.s32.totalorder %s17, 4
      %s27 = sphi 0, %s29
      %s30 = sphi 0, %s27
      %s31 = sphi 0, %s30
      %s47 = sphi 0, %s31
      %s53 = sphi 0, %s55
      %s56 = sphi 0, %s53
      %s57 = sphi 0, %s56
      %s73 = sphi 0, %s57
      %s79 = sphi 0, %s81
      %s82 = sphi 0, %s79
      %s83 = sphi 0, %s82
      %s99 = sphi 0, %s83
    $region4: #{tpu_custom_call.1} parent=1 // loop_header_branch
      %20 = sbr.rel (%p18) target = $region8
    $region5: #{tpu_custom_call.1} parent=1 // loop_body
      %s22 = ssub.s32 %s17, 1
      %s23 = ssub.s32 %s17, 2
      %s24 = sadd.s32 %s17, 1
      %s25 = ssub.s32 %s17, %s24
      %p26 = scmp.eq.s32.totalorder %s25, 0
      %s28 = sadd.s32 %s27, 1
      %s29 = scalar_select %p26, %s27, %s28
      %p32 = pneg %p26
      %p33 = scmp.eq.s32.totalorder %s17, 1
      %p34 = por %p32, %p33
      %p35 = scmp.ne.s32.totalorder %s27, %s30
      %p36 = scmp.eq.s32.totalorder %s17, 0
      %p37 = por %p35, %p36
      %p38 = scmp.ne.s32.totalorder %s27, %s30
      %p39 = scmp.eq.s32.totalorder %s22, 1
      %p40 = por %p38, %p39
      %p41 = scmp.ne.s32.totalorder %s30, %s31
      %p42 = scmp.eq.s32.totalorder %s22, 0
      %p43 = por %p41, %p42
      %p44 = scmp.ne.s32.totalorder %s30, %s31
      %p45 = scmp.eq.s32.totalorder %s23, 1
      %p46 = por %p44, %p45
      %p48 = scmp.ne.s32.totalorder %s31, %s47
      %p49 = scmp.eq.s32.totalorder %s23, 0
      %p50 = por %p48, %p49
      %s51 = ssub.s32 %s17, %s24
      %p52 = scmp.eq.s32.totalorder %s51, 0
      %s54 = sadd.s32 %s53, 1
      %s55 = scalar_select %p52, %s53, %s54
      %p58 = pneg %p52
      %p59 = scmp.eq.s32.totalorder %s17, 1
      %p60 = por %p58, %p59
      %p61 = scmp.ne.s32.totalorder %s53, %s56
      %p62 = scmp.eq.s32.totalorder %s17, 0
      %p63 = por %p61, %p62
      %p64 = scmp.ne.s32.totalorder %s53, %s56
      %p65 = scmp.eq.s32.totalorder %s22, 1
      %p66 = por %p64, %p65
      %p67 = scmp.ne.s32.totalorder %s56, %s57
      %p68 = scmp.eq.s32.totalorder %s22, 0
      %p69 = por %p67, %p68
      %p70 = scmp.ne.s32.totalorder %s56, %s57
      %p71 = scmp.eq.s32.totalorder %s23, 1
      %p72 = por %p70, %p71
      %p74 = scmp.ne.s32.totalorder %s57, %s73
      %p75 = scmp.eq.s32.totalorder %s23, 0
      %p76 = por %p74, %p75
      %s77 = ssub.s32 %s17, %s24
      %p78 = scmp.eq.s32.totalorder %s77, 0
      %s80 = sadd.s32 %s79, 1
      %s81 = scalar_select %p78, %s79, %s80
      %p84 = pneg %p78
      %p85 = scmp.eq.s32.totalorder %s17, 1
      %p86 = por %p84, %p85
      %p87 = scmp.ne.s32.totalorder %s79, %s82
      %p88 = scmp.eq.s32.totalorder %s17, 0
      %p89 = por %p87, %p88
      %p90 = scmp.ne.s32.totalorder %s79, %s82
      %p91 = scmp.eq.s32.totalorder %s22, 1
      %p92 = por %p90, %p91
      %p93 = scmp.ne.s32.totalorder %s82, %s83
      %p94 = scmp.eq.s32.totalorder %s22, 0
      %p95 = por %p93, %p94
      %p96 = scmp.ne.s32.totalorder %s82, %s83
      %p97 = scmp.eq.s32.totalorder %s23, 1
      %p98 = por %p96, %p97
      %p100 = scmp.ne.s32.totalorder %s83, %s99
      %p101 = scmp.eq.s32.totalorder %s23, 0
      %p102 = por %p100, %p101
      %p103 = scmp.le.s32.totalorder 1, %s17
      %p104 = scmp.lt.s32.totalorder %s17, 3
      %p105 = pnand %p103, %p104
      %p106 = pneg %p105
      // Predicated region
      $region9: #{tpu_custom_call.1} parent=5 // pred_check
        _
      $region10: #{tpu_custom_call.1} parent=5 // pred_check_branch
        %108 = sbr.rel (%p105) target = $region12
      $region11: #{tpu_custom_call.1} parent=5 // pred_region
        %s109 = ssub.s32 %s17, 1
      $region12: #{tpu_custom_call.1} parent=5 // pred_fallthru
        _
      %p110 = scmp.lt.s32.totalorder %s17, 2
      // Predicated region
      $region13: #{tpu_custom_call.1} parent=5 // pred_check
        %p111 = pneg %p110
      $region14: #{tpu_custom_call.1} parent=5 // pred_check_branch
        %113 = sbr.rel (%p111) target = $region16
      $region15: #{tpu_custom_call.1} parent=5 // pred_region
        // Predicated region
        $region17: #{tpu_custom_call.1} parent=15 // pred_check
          %p114 = pneg %p37
        $region18: #{tpu_custom_call.1} parent=15 // pred_check_branch
          %116 = sbr.rel (%p114) target = $region20
        $region19: #{tpu_custom_call.1} parent=15 // pred_region
          %s117 = sand.u32 %s27, 1
          %s118 = scalar_lea.sflag [#allocation3], %s117
          %s119 = sand.u32 %s27, 1
          %s120 = smul.addr %s119, 8
          %s121 = scalar_lea.vmem [#allocation2], %s120
          %s123 = ssub.s32 128, 128
          %124 = vsyncadd %s118, %s123
          %s125 = smul.addr %s17, 128
          %s126 = scalar_lea.hbm %s0, %s125
          %s128 = sshll.u32 %s121, 4
          %s129 = int_to_ptr.vmem [resolvable:$true] %s128
          %131 = dma.hbm_to_vmem [thread:$0]  %s126, 128, %s129, %s118
        $region20: #{tpu_custom_call.1} parent=15 // pred_fallthru
          _
        // Predicated region
        $region21: #{tpu_custom_call.1} parent=15 // pred_check
          %p132 = pneg %p63
        $region22: #{tpu_custom_call.1} parent=15 // pred_check_branch
          %134 = sbr.rel (%p132) target = $region24
        $region23: #{tpu_custom_call.1} parent=15 // pred_region
          %s135 = sand.u32 %s53, 1
          %s136 = scalar_lea.sflag [#allocation6], %s135
          %s137 = sand.u32 %s53, 1
          %s138 = smul.addr %s137, 8
          %s139 = scalar_lea.vmem [#allocation5], %s138
          %s141 = ssub.s32 128, 128
          %142 = vsyncadd %s136, %s141
          %s143 = smul.addr %s17, 128
          %s144 = scalar_lea.hbm %s1, %s143
          %s146 = sshll.u32 %s139, 4
          %s147 = int_to_ptr.vmem [resolvable:$true] %s146
          %149 = dma.hbm_to_vmem [thread:$0]  %s144, 128, %s147, %s136
        $region24: #{tpu_custom_call.1} parent=15 // pred_fallthru
          _
      $region16: #{tpu_custom_call.1} parent=5 // pred_fallthru
        _
      %p150 = scmp.le.s32.totalorder 1, %s17
      %p151 = scmp.lt.s32.totalorder %s17, 3
      %p152 = pnand %p150, %p151
      %p153 = pneg %p152
      // Predicated region
      $region25: #{tpu_custom_call.1} parent=5 // pred_check
        _
      $region26: #{tpu_custom_call.1} parent=5 // pred_check_branch
        %155 = sbr.rel (%p152) target = $region28
      $region27: #{tpu_custom_call.1} parent=5 // pred_region
        %s156 = ssub.s32 %s17, 1
        %s157 = sand.u32 %s30, 1
        %s158 = scalar_lea.sflag [#allocation3], %s157
        %s159 = sand.u32 %s30, 1
        %s160 = smul.addr %s159, 8
        %s161 = scalar_lea.vmem [#allocation2], %s160
        // Predicated region
        $region29: #{tpu_custom_call.1} parent=27 // pred_check
          %p162 = pneg %p43
        $region30: #{tpu_custom_call.1} parent=27 // pred_check_branch
          %164 = sbr.rel (%p162) target = $region32
        $region31: #{tpu_custom_call.1} parent=27 // pred_region
          %165 = dma.done %s158, 128
        $region32: #{tpu_custom_call.1} parent=27 // pred_fallthru
          _
        %s166 = sand.u32 %s56, 1
        %s167 = scalar_lea.sflag [#allocation6], %s166
        %s168 = sand.u32 %s56, 1
        %s169 = smul.addr %s168, 8
        %s170 = scalar_lea.vmem [#allocation5], %s169
        // Predicated region
        $region33: #{tpu_custom_call.1} parent=27 // pred_check
          %p171 = pneg %p69
        $region34: #{tpu_custom_call.1} parent=27 // pred_check_branch
          %173 = sbr.rel (%p171) target = $region36
        $region35: #{tpu_custom_call.1} parent=27 // pred_region
          %174 = dma.done %s167, 128
        $region36: #{tpu_custom_call.1} parent=27 // pred_fallthru
          _
        %s175 = sand.u32 %s30, 1
        %s176 = scalar_lea.sflag [#allocation3], %s175
        %s177 = sand.u32 %s30, 1
        %s178 = smul.addr %s177, 8
        %s179 = scalar_lea.vmem [#allocation2], %s178
        %p180 = pneg %p43
        %p181 = pneg %p40
        %s182 = sand.u32 %s56, 1
        %s183 = scalar_lea.sflag [#allocation6], %s182
        %s184 = sand.u32 %s56, 1
        %s185 = smul.addr %s184, 8
        %s186 = scalar_lea.vmem [#allocation5], %s185
        %p187 = pneg %p69
        %p188 = pneg %p66
        %p189 = pneg %p95
        %p190 = pneg %p92
        %s191 = sand.u32 %s82, 1
        %s192 = scalar_lea.sflag [#allocation4], %s191
        %s193 = sand.u32 %s82, 1
        %s194 = scalar_lea.vmem [#allocation7], %s193
        %v195 = vld [vmem:[%s161] sm:$0xff]
        %v196 = vld [vmem:[%s170] sm:$0xff]
        %v197 = vsub.f32 %v195, %v196
        %v198 = vand.u32 2147483647, %v197
        %199 = vmin.xlane.f32.xlu0 %v198
        %v200 = vpop.xlane.xlu0 %199
        %v201 = vrot.slane %v200, 4
        %v202 = vmin.f32 %v200, %v201
        %v203 = vrot.slane %v202, 2
        %v204 = vmin.f32 %v202, %v203
        %v205 = vrot.slane %v204, 1
        %v206 = vmin.f32 %v204, %v205
        %207 = vmax.xlane.f32.xlu0 %v198
        %v208 = vpop.xlane.xlu0 %207
        %v209 = vrot.slane %v208, 4
        %v210 = vmax.f32 %v208, %v209
        %v211 = vrot.slane %v210, 2
        %v212 = vmax.f32 %v210, %v211
        %v213 = vrot.slane %v212, 1
        %v214 = vmax.f32 %v212, %v213
        %v215 = vsub.f32 %v214, %v206
        %v216 = vrcp.pop %v215
        %v217 = vmul.f32 10.0, %v216
        %v218 = vsub.f32 %v198, %v206
        %v219 = vmul.f32 %v218, %v217
        %v220 = vmul.f32 %v219, %v197
        %v221 = vand.u32 2147483647, %v220
        %222 = vadd.xlane.f32.xlu0 %v221
        %v223 = vpop.xlane.xlu0 %222
        %v224 = vrot.slane %v223, 4
        %v225 = vadd.f32 %v223, %v224
        %v226 = vrot.slane %v225, 2
        %v227 = vadd.f32 %v225, %v226
        %v228 = vrot.slane %v227, 1
        %v229 = vadd.f32 %v227, %v228
        %230 = vst [vmem:[%s194] sm:$0x1] %v229
        %s231 = sand.u32 %s82, 1
        %s232 = scalar_lea.sflag [#allocation4], %s231
        %s233 = sand.u32 %s82, 1
        %s234 = scalar_lea.vmem [#allocation7], %s233
        // Predicated region
        $region37: #{tpu_custom_call.1} parent=27 // pred_check
          %p235 = pneg %p92
        $region38: #{tpu_custom_call.1} parent=27 // pred_check_branch
          %237 = sbr.rel (%p235) target = $region40
        $region39: #{tpu_custom_call.1} parent=27 // pred_region
          %s239 = ssub.s32 16, 16
          %240 = vsyncadd %s232, %s239
          %s241 = smul.addr %s22, 16
          %s242 = scalar_lea.hbm %s2, %s241
          %s244 = sshll.u32 %s234, 4
          %s245 = int_to_ptr.vmem [resolvable:$true] %s244
          %247 = dma.vmem_to_hbm [thread:$0]  %s245, 16, %s242, %s232
        $region40: #{tpu_custom_call.1} parent=27 // pred_fallthru
          _
      $region28: #{tpu_custom_call.1} parent=5 // pred_fallthru
        _
      %p248 = scmp.le.s32.totalorder 2, %s17
      // Predicated region
      $region41: #{tpu_custom_call.1} parent=5 // pred_check
        %p249 = pneg %p248
      $region42: #{tpu_custom_call.1} parent=5 // pred_check_branch
        %251 = sbr.rel (%p249) target = $region44
      $region43: #{tpu_custom_call.1} parent=5 // pred_region
        %s252 = ssub.s32 %s17, 2
        // Predicated region
        $region45: #{tpu_custom_call.1} parent=43 // pred_check
          %p253 = pneg %p98
        $region46: #{tpu_custom_call.1} parent=43 // pred_check_branch
          %255 = sbr.rel (%p253) target = $region48
        $region47: #{tpu_custom_call.1} parent=43 // pred_region
          %s256 = sand.u32 %s83, 1
          %s257 = scalar_lea.sflag [#allocation4], %s256
          %s258 = sand.u32 %s83, 1
          %s259 = scalar_lea.vmem [#allocation7], %s258
          %260 = dma.done %s257, 16
        $region48: #{tpu_custom_call.1} parent=43 // pred_fallthru
          _
      $region44: #{tpu_custom_call.1} parent=5 // pred_fallthru
        _
    $region6: #{tpu_custom_call.1} parent=1 // loop_footer
      %s21 = sadd.s32 1, %s17
    $region7: #{tpu_custom_call.1} parent=1 // loop_footer_branch
      %16 = sbr.rel target = $region3
    $region8: #{tpu_custom_call.1} parent=1 // loop_exit
      _
    %261 = vsyncpa [#allocation3], 1
    %s262 = scalar_lea.sflag [#allocation3], 1
    %263 = vsyncpa %s262, 1
    %264 = vsyncpa [#allocation6], 1
    %s265 = scalar_lea.sflag [#allocation6], 1
    %266 = vsyncpa %s265, 1
    %267 = vsyncpa [#allocation4], 1
    %s268 = scalar_lea.sflag [#allocation4], 1
    %269 = vsyncpa %s268, 1

</llo_original>
